<compile_context>
chip_gen: v6e
topology: v6e:2x2x1
jax: 0.10.0
libtpu: 0.0.40
codegen_flags: <defaults>
</compile_context>

<pallas_src>
import jax
import jax.numpy as jnp
from jax.experimental import pallas as pl
from jax.experimental.pallas import tpu as pltpu


def glove_kernel(idx_ref, len_ref, ew_ref, bias_ref, out_ref, acc_ref):
    """One (batch-tile, vocab-tile) grid step.

    idx_ref  : (L, TB)  int32  VMEM  token ids, batch along lanes
    len_ref  : (1, TB)  f32    VMEM  true sequence lengths (lane-dense)
    ew_ref   : (1, TV)  f32    VMEM  fused embedding*linear vector tile
    bias_ref : (1,)     f32    SMEM  linear bias
    out_ref  : (1, TB)  f32    VMEM  sigmoid(logits), batch along lanes
    acc_ref  : (1, TB)  f32    VMEM  logit accumulator across vocab tiles
    """
    v_step = pl.program_id(1)

    @pl.when(v_step == 0)
    def _init():
        acc_ref[...] = jnp.zeros_like(acc_ref)

    L, TB = idx_ref.shape
    TV = ew_ref.shape[1]

    idx = idx_ref[...]                                   # (L, TB) int32
    v_base = v_step * TV
    vocab_ids = v_base + jax.lax.broadcasted_iota(jnp.int32, (TV, TB), 0)

    # counts[v, b] = #{ l : idx[b, l] == v } for this vocab tile.
    # L is small & static -> unrolled lane-dense VPU adds on (TV, TB) tiles.
    counts = jnp.zeros((TV, TB), jnp.float32)
    for l in range(L):
        counts = counts + (vocab_ids == idx[l:l + 1, :]).astype(jnp.float32)

    # Contract the vocab tile on the MXU: (1, TV) @ (TV, TB) -> (1, TB).
    acc_ref[...] += jnp.dot(ew_ref[...], counts,
                            preferred_element_type=jnp.float32)

    @pl.when(v_step == pl.num_programs(1) - 1)
    def _finalize():
        logits = acc_ref[...] / len_ref[...] + bias_ref[0]
        out_ref[...] = jax.nn.sigmoid(logits)


def glove_classifier(indices, lengths, emb_tbl, lin_w, lin_b, *, tb=128, tv=128):
    """indices: (B, L) int32 padded token ids (pad id 0), lengths: (B,) f32,
    emb_tbl: (V, D) f32, lin_w: (D, 1) f32, lin_b: (1,) f32 -> (B, 1) f32."""
    B, L = indices.shape
    V, D = emb_tbl.shape

    # Fuse Linear weight into the embedding table (done once, outside kernel).
    ew = (emb_tbl.astype(jnp.float32) @ lin_w.astype(jnp.float32)).reshape(1, V)

    B_pad = pl.cdiv(B, tb) * tb
    V_pad = pl.cdiv(V, tv) * tv

    ew_p = jnp.pad(ew, ((0, 0), (0, V_pad - V)))                         # (1, V_pad)
    idx_t = jnp.pad(indices.astype(jnp.int32).T, ((0, 0), (0, B_pad - B)))  # (L, B_pad)
    len_row = jnp.pad(lengths.astype(jnp.float32).reshape(1, B),
                      ((0, 0), (0, B_pad - B)), constant_values=1.0)     # (1, B_pad)
    bias = lin_b.astype(jnp.float32).reshape(1)                          # (1,)

    grid = (B_pad // tb, V_pad // tv)  # (parallel batch, reduction vocab last)

    out = pl.pallas_call(
        glove_kernel,
        out_shape=jax.ShapeDtypeStruct((1, B_pad), jnp.float32),
        grid_spec=pltpu.PrefetchScalarGridSpec(
            num_scalar_prefetch=0,
            grid=grid,
            in_specs=[
                pl.BlockSpec((L, tb), lambda b, v: (0, b)),   # idx (transposed)
                pl.BlockSpec((1, tb), lambda b, v: (0, b)),   # lengths (lane-dense)
                pl.BlockSpec((1, tv), lambda b, v: (0, v)),   # fused emb*W vector
                pl.BlockSpec(memory_space=pltpu.MemorySpace.SMEM),  # bias scalar
            ],
            out_specs=pl.BlockSpec((1, tb), lambda b, v: (0, b)),
            scratch_shapes=[pltpu.VMEM((1, tb), jnp.float32)],
        ),
        compiler_params=pltpu.CompilerParams(
            dimension_semantics=("parallel", "arbitrary")),
    )(idx_t, len_row, ew_p, bias)

    return out[0, :B].reshape(B, 1)


def glove_reference(indices, lengths, emb_tbl, lin_w, lin_b):
    # Pure-JAX reference mirroring the PyTorch forward semantics.
    gathered = emb_tbl[indices]                          # (B, L, D)
    mean = gathered.sum(axis=1) / lengths[:, None]       # (B, D)
    return jax.nn.sigmoid(mean @ lin_w + lin_b)          # (B, 1)


if __name__ == "__main__":
    # TODO(synk): format_input / vocabulary() are host-side Python list
    # preprocessing; they are reproduced here as deterministic padded arrays.
    B, L, V, D = 8, 8, 32, 32  # batch, max seq len, vocab size, embedding dim

    key = jax.random.PRNGKey(0)
    k_emb, k_w, k_b, k_idx, k_len = jax.random.split(key, 5)

    # Deterministic synthetic GloVe weights + classifier params.
    emb_tbl = jax.random.normal(k_emb, (V, D), dtype=jnp.float32)
    lin_w = jax.random.normal(k_w, (D, 1), dtype=jnp.float32) * 0.1
    lin_b = jax.random.normal(k_b, (1,), dtype=jnp.float32) * 0.1

    # Synthetic padded batch (as produced by format_input): pad id = 0.
    lengths_i = jax.random.randint(k_len, (B,), 3, L + 1)       # true lengths in [3, L]
    raw_idx = jax.random.randint(k_idx, (B, L), 0, V)           # random token ids
    pos = jnp.arange(L)[None, :]
    indices = jnp.where(pos < lengths_i[:, None], raw_idx, 0).astype(jnp.int32)
    lengths = lengths_i.astype(jnp.float32)                     # (B,)

    out = glove_classifier(indices, lengths, emb_tbl, lin_w, lin_b)
    out = jax.block_until_ready(out)

    ref = glove_reference(indices, lengths, emb_tbl, lin_w, lin_b)
    assert out.shape == (B, 1)
    assert jnp.allclose(out, ref, atol=1e-5, rtol=1e-5), (out, ref)

    print("KERNEL_OK")
</pallas_src>

<mosaic_0001>
module attributes {stable_mosaic.version = 11 : i64} {
  func.func @glove_kernel(%arg0: i32, %arg1: i32, %arg2: memref<8x128xi32, #tpu.memory_space<vmem>>, %arg3: memref<1x128xf32, #tpu.memory_space<vmem>>, %arg4: memref<1x128xf32, #tpu.memory_space<vmem>>, %arg5: memref<1xf32, #tpu.memory_space<smem>>, %arg6: memref<1x128xf32, #tpu.memory_space<vmem>>, %arg7: memref<1x128xf32, #tpu.memory_space<vmem>>) attributes {dimension_semantics = [#tpu.dimension_semantics<parallel>, #tpu.dimension_semantics<arbitrary>], iteration_bounds = array<i64: 1, 1>, scalar_prefetch = 0 : i64, scratch_operands = 1 : i64, tpu.core_type = #tpu.core_type<tc>, window_params = [{transform_indices = @transform_0, window_bounds = array<i64: 8, 128>}, {transform_indices = @transform_1, window_bounds = array<i64: 1, 128>}, {transform_indices = @transform_2, window_bounds = array<i64: 1, 128>}, {transform_indices = @transform_3, window_bounds = array<i64: 1>}, {transform_indices = @transform_4, window_bounds = array<i64: 1, 128>}]} {
    %c0_i32 = arith.constant 0 : i32
    %0 = arith.cmpi eq, %arg1, %c0_i32 : i32
    %1 = arith.extui %0 : i1 to i32
    %c0_i32_0 = arith.constant 0 : i32
    %2 = arith.cmpi ne, %1, %c0_i32_0 : i32
    scf.if %2 {
      %cst_11 = arith.constant 0.000000e+00 : f32
      %65 = vector.broadcast %cst_11 : f32 to vector<1x128xf32>
      %c0_12 = arith.constant 0 : index
      %c0_13 = arith.constant 0 : index
      %66 = vector.load %arg7[%c0_12, %c0_13] : memref<1x128xf32, #tpu.memory_space<vmem>>, vector<1x128xf32>
      tpu.vector_store %arg7[%c0_12, %c0_13], %65 {strides = array<i32>} : memref<1x128xf32, #tpu.memory_space<vmem>>, vector<1x128xf32>,
    } else {
    }
    %c0 = arith.constant 0 : index
    %c0_1 = arith.constant 0 : index
    %3 = vector.load %arg2[%c0, %c0_1] : memref<8x128xi32, #tpu.memory_space<vmem>>, vector<8x128xi32>
    %c128_i32 = arith.constant 128 : i32
    %4 = arith.muli %arg1, %c128_i32 : i32
    %5 = tpu.iota {dimensions = array<i32: 0>} : vector<128x128xi32>
    %6 = vector.broadcast %4 : i32 to vector<128x128xi32>
    %7 = arith.addi %6, %5 : vector<128x128xi32>
    %cst = arith.constant 0.000000e+00 : f32
    %8 = vector.broadcast %cst : f32 to vector<128x128xf32>
    %9 = vector.extract_strided_slice %3 {offsets = [0, 0], sizes = [1, 128], strides = [1, 1]} : vector<8x128xi32> to vector<1x128xi32>
    %10 = vector.broadcast %9 : vector<1x128xi32> to vector<128x128xi32>
    %11 = arith.cmpi eq, %7, %10 : vector<128x128xi32>
    %12 = arith.extui %11 : vector<128x128xi1> to vector<128x128xi32>
    %13 = arith.sitofp %12 : vector<128x128xi32> to vector<128x128xf32>
    %14 = arith.addf %8, %13 : vector<128x128xf32>
    %15 = vector.extract_strided_slice %3 {offsets = [1, 0], sizes = [1, 128], strides = [1, 1]} : vector<8x128xi32> to vector<1x128xi32>
    %16 = vector.broadcast %15 : vector<1x128xi32> to vector<128x128xi32>
    %17 = arith.cmpi eq, %7, %16 : vector<128x128xi32>
    %18 = arith.extui %17 : vector<128x128xi1> to vector<128x128xi32>
    %19 = arith.sitofp %18 : vector<128x128xi32> to vector<128x128xf32>
    %20 = arith.addf %14, %19 : vector<128x128xf32>
    %21 = vector.extract_strided_slice %3 {offsets = [2, 0], sizes = [1, 128], strides = [1, 1]} : vector<8x128xi32> to vector<1x128xi32>
    %22 = vector.broadcast %21 : vector<1x128xi32> to vector<128x128xi32>
    %23 = arith.cmpi eq, %7, %22 : vector<128x128xi32>
    %24 = arith.extui %23 : vector<128x128xi1> to vector<128x128xi32>
    %25 = arith.sitofp %24 : vector<128x128xi32> to vector<128x128xf32>
    %26 = arith.addf %20, %25 : vector<128x128xf32>
    %27 = vector.extract_strided_slice %3 {offsets = [3, 0], sizes = [1, 128], strides = [1, 1]} : vector<8x128xi32> to vector<1x128xi32>
    %28 = vector.broadcast %27 : vector<1x128xi32> to vector<128x128xi32>
    %29 = arith.cmpi eq, %7, %28 : vector<128x128xi32>
    %30 = arith.extui %29 : vector<128x128xi1> to vector<128x128xi32>
    %31 = arith.sitofp %30 : vector<128x128xi32> to vector<128x128xf32>
    %32 = arith.addf %26, %31 : vector<128x128xf32>
    %33 = vector.extract_strided_slice %3 {offsets = [4, 0], sizes = [1, 128], strides = [1, 1]} : vector<8x128xi32> to vector<1x128xi32>
    %34 = vector.broadcast %33 : vector<1x128xi32> to vector<128x128xi32>
    %35 = arith.cmpi eq, %7, %34 : vector<128x128xi32>
    %36 = arith.extui %35 : vector<128x128xi1> to vector<128x128xi32>
    %37 = arith.sitofp %36 : vector<128x128xi32> to vector<128x128xf32>
    %38 = arith.addf %32, %37 : vector<128x128xf32>
    %39 = vector.extract_strided_slice %3 {offsets = [5, 0], sizes = [1, 128], strides = [1, 1]} : vector<8x128xi32> to vector<1x128xi32>
    %40 = vector.broadcast %39 : vector<1x128xi32> to vector<128x128xi32>
    %41 = arith.cmpi eq, %7, %40 : vector<128x128xi32>
    %42 = arith.extui %41 : vector<128x128xi1> to vector<128x128xi32>
    %43 = arith.sitofp %42 : vector<128x128xi32> to vector<128x128xf32>
    %44 = arith.addf %38, %43 : vector<128x128xf32>
    %45 = vector.extract_strided_slice %3 {offsets = [6, 0], sizes = [1, 128], strides = [1, 1]} : vector<8x128xi32> to vector<1x128xi32>
    %46 = vector.broadcast %45 : vector<1x128xi32> to vector<128x128xi32>
    %47 = arith.cmpi eq, %7, %46 : vector<128x128xi32>
    %48 = arith.extui %47 : vector<128x128xi1> to vector<128x128xi32>
    %49 = arith.sitofp %48 : vector<128x128xi32> to vector<128x128xf32>
    %50 = arith.addf %44, %49 : vector<128x128xf32>
    %51 = vector.extract_strided_slice %3 {offsets = [7, 0], sizes = [1, 128], strides = [1, 1]} : vector<8x128xi32> to vector<1x128xi32>
    %52 = vector.broadcast %51 : vector<1x128xi32> to vector<128x128xi32>
    %53 = arith.cmpi eq, %7, %52 : vector<128x128xi32>
    %54 = arith.extui %53 : vector<128x128xi1> to vector<128x128xi32>
    %55 = arith.sitofp %54 : vector<128x128xi32> to vector<128x128xf32>
    %56 = arith.addf %50, %55 : vector<128x128xf32>
    %c0_2 = arith.constant 0 : index
    %c0_3 = arith.constant 0 : index
    %57 = vector.load %arg7[%c0_2, %c0_3] : memref<1x128xf32, #tpu.memory_space<vmem>>, vector<1x128xf32>
    %c0_4 = arith.constant 0 : index
    %c0_5 = arith.constant 0 : index
    %58 = vector.load %arg4[%c0_4, %c0_5] : memref<1x128xf32, #tpu.memory_space<vmem>>, vector<1x128xf32>
    %cst_6 = arith.constant dense<0.000000e+00> : vector<1x128xf32>
    %59 = tpu.matmul %58, %56, %cst_6 {dimension_numbers = #tpu.dot_dimension_numbers<[1], [0], [0], [1], [0, 0, 1, 1], [], []>} : vector<1x128xf32>, vector<128x128xf32>, vector<1x128xf32> -> vector<1x128xf32>
    %60 = arith.addf %57, %59 : vector<1x128xf32>
    %c0_7 = arith.constant 0 : index
    %c0_8 = arith.constant 0 : index
    %61 = vector.load %arg7[%c0_7, %c0_8] : memref<1x128xf32, #tpu.memory_space<vmem>>, vector<1x128xf32>
    tpu.vector_store %arg7[%c0_7, %c0_8], %60 {strides = array<i32>} : memref<1x128xf32, #tpu.memory_space<vmem>>, vector<1x128xf32>,
    %c0_i32_9 = arith.constant 0 : i32
    %62 = arith.cmpi eq, %arg1, %c0_i32_9 : i32
    %63 = arith.extui %62 : i1 to i32
    %c0_i32_10 = arith.constant 0 : i32
    %64 = arith.cmpi ne, %63, %c0_i32_10 : i32
    scf.if %64 {
      %c0_11 = arith.constant 0 : index
      %c0_12 = arith.constant 0 : index
      %65 = vector.load %arg7[%c0_11, %c0_12] : memref<1x128xf32, #tpu.memory_space<vmem>>, vector<1x128xf32>
      %c0_13 = arith.constant 0 : index
      %c0_14 = arith.constant 0 : index
      %66 = vector.load %arg3[%c0_13, %c0_14] : memref<1x128xf32, #tpu.memory_space<vmem>>, vector<1x128xf32>
      %67 = arith.divf %65, %66 : vector<1x128xf32>
      %c0_15 = arith.constant 0 : index
      %68 = memref.load %arg5[%c0_15] : memref<1xf32, #tpu.memory_space<smem>>
      %69 = vector.broadcast %68 : f32 to vector<1x128xf32>
      %70 = arith.addf %67, %69 : vector<1x128xf32>
      %71 = arith.negf %70 : vector<1x128xf32>
      %72 = math.exp %71 : vector<1x128xf32>
      %cst_16 = arith.constant 1.000000e+00 : f32
      %73 = vector.broadcast %cst_16 : f32 to vector<1x128xf32>
      %74 = arith.addf %73, %72 : vector<1x128xf32>
      %75 = arith.divf %73, %74 : vector<1x128xf32>
      %c0_17 = arith.constant 0 : index
      %c0_18 = arith.constant 0 : index
      %76 = vector.load %arg6[%c0_17, %c0_18] : memref<1x128xf32, #tpu.memory_space<vmem>>, vector<1x128xf32>
      tpu.vector_store %arg6[%c0_17, %c0_18], %75 {strides = array<i32>} : memref<1x128xf32, #tpu.memory_space<vmem>>, vector<1x128xf32>,
    } else {
    }
    return
  }
  func.func @transform_0(%arg0: i32, %arg1: i32) -> (i32, i32) {
    %c0_i32 = arith.constant 0 : i32
    %c0_i32_0 = arith.constant 0 : i32
    return %c0_i32, %arg0 : i32, i32
  }
  func.func @transform_1(%arg0: i32, %arg1: i32) -> (i32, i32) {
    %c0_i32 = arith.constant 0 : i32
    %c0_i32_0 = arith.constant 0 : i32
    return %c0_i32, %arg0 : i32, i32
  }
  func.func @transform_2(%arg0: i32, %arg1: i32) -> (i32, i32) {
    %c0_i32 = arith.constant 0 : i32
    %c0_i32_0 = arith.constant 0 : i32
    return %c0_i32, %arg1 : i32, i32
  }
  func.func @transform_3(%arg0: i32, %arg1: i32) -> i32 {
    %c0_i32 = arith.constant 0 : i32
    %c0_i32_0 = arith.constant 0 : i32
    return %c0_i32 : i32
  }
  func.func @transform_4(%arg0: i32, %arg1: i32) -> (i32, i32) {
    %c0_i32 = arith.constant 0 : i32
    %c0_i32_0 = arith.constant 0 : i32
    return %c0_i32, %arg0 : i32, i32
  }
}

</mosaic_0001>

<llo_original>
// kernel: tpu_custom_call.1
$region0: #{tpu_custom_call.1}
  #allocation0 [shape = 'u32[]', space=smem, size = 0x4, offset = 0x4, fixed_abs, tag = 'smem constant byte address 0x4 - core index']
  #allocation1 [shape = 'u32[144,128]{1,0:T(1,128)}', space=vmem, size = 0x12000, scoped, tag = 'internal scratch']
  #allocation2 [shape = 'f32[1,128]{1,0:T(1,128)}', space=vmem, size = 0x200, scoped, tag = 'scratch operand']
  #allocation3 [shape = 'f32[1]{0:T(128)S(6)}', space=smem, size = 0x200, scoped, tag = 'scoped memory for tpu_custom_call.1']
  %s0 = inlined_call_operand.hbm [shape: s32[8,128], index: 0, kind: input, shape index: {}]
  %s1 = inlined_call_operand.vmem [shape: f32[1,128], index: 1, kind: input, shape index: {}]
  %s2 = inlined_call_operand.vmem [shape: f32[1,128], index: 2, kind: input, shape index: {}]
  %s3 = inlined_call_operand.<no memory space> [shape: f32[1], index: 3, kind: input, shape index: {}]
  %s4 = inlined_call_operand.hbm [shape: f32[1,128], index: 4, kind: output, shape index: {}]
  %s5 = sld [smem:[#allocation0]]
  $region38: #{tpu_custom_call.1} parent=0
    _
  %s7 = ssub.s32 1, %s5
  %s8 = scalar_select 0, %s7, %s5
  %9 = sst [smem:[#allocation3]] %s3
  $region1: #{tpu_custom_call.1} parent=0
    #allocation4 [shape = 'u8[4096]{0}', space=vmem, size = 0x1000, scoped, tag = 'input window, operand 0, single buffered']
    #allocation5 [shape = 's32[1]{0}', space=sflag, size = 0x4, scoped, tag = 'scoped memory for tpu_custom_call.1']
    #allocation6 [shape = 's32[1]{0}', space=sflag, size = 0x4, scoped, tag = 'scoped memory for tpu_custom_call.1']
    #allocation7 [shape = 'u8[512]{0}', space=vmem, size = 0x400, scoped, tag = 'output window, operand 0, single buffered']
    %10 = vsyncpa [#allocation5], 0
    %11 = vsyncpa [#allocation6], 0
    // Predicated region
    $region2: #{tpu_custom_call.1} parent=1 // pred_check
      _
    $region3: #{tpu_custom_call.1} parent=1 // pred_check_branch
      %13 = sbr.rel (0) target = $region5
    $region4: #{tpu_custom_call.1} parent=1 // pred_region
      %s15 = ssub.s32 128, 128
      %16 = vsyncadd [#allocation5], %s15
      %s18 = sshll.u32 [#allocation4], 4
      %s19 = int_to_ptr.vmem [resolvable:$true] %s18
      %21 = dma.hbm_to_vmem [thread:$0]  %s0, 128, %s19, [#allocation5]
    $region5: #{tpu_custom_call.1} parent=1 // pred_fallthru
      _
    // Predicated region
    $region6: #{tpu_custom_call.1} parent=1 // pred_check
      _
    $region7: #{tpu_custom_call.1} parent=1 // pred_check_branch
      %23 = sbr.rel (0) target = $region9
    $region8: #{tpu_custom_call.1} parent=1 // pred_region
      _
    $region9: #{tpu_custom_call.1} parent=1 // pred_fallthru
      _
    // Predicated region
    $region10: #{tpu_custom_call.1} parent=1 // pred_check
      _
    $region11: #{tpu_custom_call.1} parent=1 // pred_check_branch
      %25 = sbr.rel (0) target = $region13
    $region12: #{tpu_custom_call.1} parent=1 // pred_region
      _
    $region13: #{tpu_custom_call.1} parent=1 // pred_fallthru
      _
    // Predicated region
    $region14: #{tpu_custom_call.1} parent=1 // pred_check
      _
    $region15: #{tpu_custom_call.1} parent=1 // pred_check_branch
      %27 = sbr.rel (0) target = $region17
    $region16: #{tpu_custom_call.1} parent=1 // pred_region
      _
    $region17: #{tpu_custom_call.1} parent=1 // pred_fallthru
      _
    // Predicated region
    $region18: #{tpu_custom_call.1} parent=1 // pred_check
      _
    $region19: #{tpu_custom_call.1} parent=1 // pred_check_branch
      %29 = sbr.rel (0) target = $region21
    $region20: #{tpu_custom_call.1} parent=1 // pred_region
      %30 = dma.done [#allocation5], 128
    $region21: #{tpu_custom_call.1} parent=1 // pred_fallthru
      _
    %p31 = scmp.eq.s32.totalorder 0, 0
    // Predicated region
    $region22: #{tpu_custom_call.1} parent=1 // pred_check
      %p32 = pneg %p31
    $region23: #{tpu_custom_call.1} parent=1 // pred_check_branch
      %34 = sbr.rel (%p32) target = $region25
    $region24: #{tpu_custom_call.1} parent=1 // pred_region
      %35 = vst [vmem:[#allocation2] sm:$0x1] 0.0
    $region25: #{tpu_custom_call.1} parent=1 // pred_fallthru
      _
    %v36 = vld [vmem:[#allocation4] sm:$0xff]
    %s37 = smul.u32 0, 128
    %v38 = vlaneseq
    %v39 = vshrl.u32 %v38, 7
    %v40 = vadd.s32 %v39, 8
    %v41 = vadd.s32 %v39, 16
    %v42 = vadd.s32 %v39, 24
    %v43 = vadd.s32 %v39, 32
    %v44 = vadd.s32 %v39, 40
    %v45 = vadd.s32 %v39, 48
    %v46 = vadd.s32 %v39, 56
    %v47 = vadd.s32 %v39, 64
    %v48 = vadd.s32 %v39, 72
    %v49 = vadd.s32 %v39, 80
    %v50 = vadd.s32 %v39, 88
    %v51 = vadd.s32 %v39, 96
    %v52 = vadd.s32 %v39, 104
    %v53 = vadd.s32 %v39, 112
    %v54 = vadd.s32 %v39, 120
    %v55 = vstv %s37
    %v56 = vadd.s32 %v55, %v39
    %v57 = vadd.s32 %v55, %v40
    %v58 = vadd.s32 %v55, %v41
    %v59 = vadd.s32 %v55, %v42
    %v60 = vadd.s32 %v55, %v43
    %v61 = vadd.s32 %v55, %v44
    %v62 = vadd.s32 %v55, %v45
    %v63 = vadd.s32 %v55, %v46
    %v64 = vadd.s32 %v55, %v47
    %v65 = vadd.s32 %v55, %v48
    %v66 = vadd.s32 %v55, %v49
    %v67 = vadd.s32 %v55, %v50
    %v68 = vadd.s32 %v55, %v51
    %v69 = vadd.s32 %v55, %v52
    %v70 = vadd.s32 %v55, %v53
    %v71 = vadd.s32 %v55, %v54
    %v72 = vlaneseq
    %v73 = vshrl.u32 %v72, 7
    %v74 = vsub.s32 0, %v73
    %v75 = vrot.slane %v36, %v74
    %vm76 = vcmp.eq.s32.totalorder %v56, %v75
    %vm77 = vcmp.eq.s32.totalorder %v57, %v75
    %vm78 = vcmp.eq.s32.totalorder %v58, %v75
    %vm79 = vcmp.eq.s32.totalorder %v59, %v75
    %vm80 = vcmp.eq.s32.totalorder %v60, %v75
    %vm81 = vcmp.eq.s32.totalorder %v61, %v75
    %vm82 = vcmp.eq.s32.totalorder %v62, %v75
    %vm83 = vcmp.eq.s32.totalorder %v63, %v75
    %vm84 = vcmp.eq.s32.totalorder %v64, %v75
    %vm85 = vcmp.eq.s32.totalorder %v65, %v75
    %vm86 = vcmp.eq.s32.totalorder %v66, %v75
    %vm87 = vcmp.eq.s32.totalorder %v67, %v75
    %vm88 = vcmp.eq.s32.totalorder %v68, %v75
    %vm89 = vcmp.eq.s32.totalorder %v69, %v75
    %vm90 = vcmp.eq.s32.totalorder %v70, %v75
    %vm91 = vcmp.eq.s32.totalorder %v71, %v75
    %v92 = vsel %vm76, 1, 0
    %v93 = vsel %vm77, 1, 0
    %v94 = vsel %vm78, 1, 0
    %v95 = vsel %vm79, 1, 0
    %v96 = vsel %vm80, 1, 0
    %v97 = vsel %vm81, 1, 0
    %v98 = vsel %vm82, 1, 0
    %v99 = vsel %vm83, 1, 0
    %v100 = vsel %vm84, 1, 0
    %v101 = vsel %vm85, 1, 0
    %v102 = vsel %vm86, 1, 0
    %v103 = vsel %vm87, 1, 0
    %v104 = vsel %vm88, 1, 0
    %v105 = vsel %vm89, 1, 0
    %v106 = vsel %vm90, 1, 0
    %v107 = vsel %vm91, 1, 0
    %v108 = vcvt.s32.f32 %v92
    %v109 = vcvt.s32.f32 %v93
    %v110 = vcvt.s32.f32 %v94
    %v111 = vcvt.s32.f32 %v95
    %v112 = vcvt.s32.f32 %v96
    %v113 = vcvt.s32.f32 %v97
    %v114 = vcvt.s32.f32 %v98
    %v115 = vcvt.s32.f32 %v99
    %v116 = vcvt.s32.f32 %v100
    %v117 = vcvt.s32.f32 %v101
    %v118 = vcvt.s32.f32 %v102
    %v119 = vcvt.s32.f32 %v103
    %v120 = vcvt.s32.f32 %v104
    %v121 = vcvt.s32.f32 %v105
    %v122 = vcvt.s32.f32 %v106
    %v123 = vcvt.s32.f32 %v107
    %v124 = vadd.f32 %v108, 0.0
    %v125 = vadd.f32 %v109, 0.0
    %v126 = vadd.f32 %v110, 0.0
    %v127 = vadd.f32 %v111, 0.0
    %v128 = vadd.f32 %v112, 0.0
    %v129 = vadd.f32 %v113, 0.0
    %v130 = vadd.f32 %v114, 0.0
    %v131 = vadd.f32 %v115, 0.0
    %v132 = vadd.f32 %v116, 0.0
    %v133 = vadd.f32 %v117, 0.0
    %v134 = vadd.f32 %v118, 0.0
    %v135 = vadd.f32 %v119, 0.0
    %v136 = vadd.f32 %v120, 0.0
    %v137 = vadd.f32 %v121, 0.0
    %v138 = vadd.f32 %v122, 0.0
    %v139 = vadd.f32 %v123, 0.0
    %v140 = vlaneseq
    %v141 = vshrl.u32 %v140, 7
    %v142 = vsub.s32 1, %v141
    %v143 = vrot.slane %v36, %v142
    %vm144 = vcmp.eq.s32.totalorder %v56, %v143
    %vm145 = vcmp.eq.s32.totalorder %v57, %v143
    %vm146 = vcmp.eq.s32.totalorder %v58, %v143
    %vm147 = vcmp.eq.s32.totalorder %v59, %v143
    %vm148 = vcmp.eq.s32.totalorder %v60, %v143
    %vm149 = vcmp.eq.s32.totalorder %v61, %v143
    %vm150 = vcmp.eq.s32.totalorder %v62, %v143
    %vm151 = vcmp.eq.s32.totalorder %v63, %v143
    %vm152 = vcmp.eq.s32.totalorder %v64, %v143
    %vm153 = vcmp.eq.s32.totalorder %v65, %v143
    %vm154 = vcmp.eq.s32.totalorder %v66, %v143
    %vm155 = vcmp.eq.s32.totalorder %v67, %v143
    %vm156 = vcmp.eq.s32.totalorder %v68, %v143
    %vm157 = vcmp.eq.s32.totalorder %v69, %v143
    %vm158 = vcmp.eq.s32.totalorder %v70, %v143
    %vm159 = vcmp.eq.s32.totalorder %v71, %v143
    %v160 = vsel %vm144, 1, 0
    %v161 = vsel %vm145, 1, 0
    %v162 = vsel %vm146, 1, 0
    %v163 = vsel %vm147, 1, 0
    %v164 = vsel %vm148, 1, 0
    %v165 = vsel %vm149, 1, 0
    %v166 = vsel %vm150, 1, 0
    %v167 = vsel %vm151, 1, 0
    %v168 = vsel %vm152, 1, 0
    %v169 = vsel %vm153, 1, 0
    %v170 = vsel %vm154, 1, 0
    %v171 = vsel %vm155, 1, 0
    %v172 = vsel %vm156, 1, 0
    %v173 = vsel %vm157, 1, 0
    %v174 = vsel %vm158, 1, 0
    %v175 = vsel %vm159, 1, 0
    %v176 = vcvt.s32.f32 %v160
    %v177 = vcvt.s32.f32 %v161
    %v178 = vcvt.s32.f32 %v162
    %v179 = vcvt.s32.f32 %v163
    %v180 = vcvt.s32.f32 %v164
    %v181 = vcvt.s32.f32 %v165
    %v182 = vcvt.s32.f32 %v166
    %v183 = vcvt.s32.f32 %v167
    %v184 = vcvt.s32.f32 %v168
    %v185 = vcvt.s32.f32 %v169
    %v186 = vcvt.s32.f32 %v170
    %v187 = vcvt.s32.f32 %v171
    %v188 = vcvt.s32.f32 %v172
    %v189 = vcvt.s32.f32 %v173
    %v190 = vcvt.s32.f32 %v174
    %v191 = vcvt.s32.f32 %v175
    %v192 = vadd.f32 %v124, %v176
    %v193 = vadd.f32 %v125, %v177
    %v194 = vadd.f32 %v126, %v178
    %v195 = vadd.f32 %v127, %v179
    %v196 = vadd.f32 %v128, %v180
    %v197 = vadd.f32 %v129, %v181
    %v198 = vadd.f32 %v130, %v182
    %v199 = vadd.f32 %v131, %v183
    %v200 = vadd.f32 %v132, %v184
    %v201 = vadd.f32 %v133, %v185
    %v202 = vadd.f32 %v134, %v186
    %v203 = vadd.f32 %v135, %v187
    %v204 = vadd.f32 %v136, %v188
    %v205 = vadd.f32 %v137, %v189
    %v206 = vadd.f32 %v138, %v190
    %v207 = vadd.f32 %v139, %v191
    %v208 = vlaneseq
    %v209 = vshrl.u32 %v208, 7
    %v210 = vsub.s32 2, %v209
    %v211 = vrot.slane %v36, %v210
    %vm212 = vcmp.eq.s32.totalorder %v56, %v211
    %vm213 = vcmp.eq.s32.totalorder %v57, %v211
    %vm214 = vcmp.eq.s32.totalorder %v58, %v211
    %vm215 = vcmp.eq.s32.totalorder %v59, %v211
    %vm216 = vcmp.eq.s32.totalorder %v60, %v211
    %vm217 = vcmp.eq.s32.totalorder %v61, %v211
    %vm218 = vcmp.eq.s32.totalorder %v62, %v211
    %vm219 = vcmp.eq.s32.totalorder %v63, %v211
    %vm220 = vcmp.eq.s32.totalorder %v64, %v211
    %vm221 = vcmp.eq.s32.totalorder %v65, %v211
    %vm222 = vcmp.eq.s32.totalorder %v66, %v211
    %vm223 = vcmp.eq.s32.totalorder %v67, %v211
    %vm224 = vcmp.eq.s32.totalorder %v68, %v211
    %vm225 = vcmp.eq.s32.totalorder %v69, %v211
    %vm226 = vcmp.eq.s32.totalorder %v70, %v211
    %vm227 = vcmp.eq.s32.totalorder %v71, %v211
    %v228 = vsel %vm212, 1, 0
    %v229 = vsel %vm213, 1, 0
    %v230 = vsel %vm214, 1, 0
    %v231 = vsel %vm215, 1, 0
    %v232 = vsel %vm216, 1, 0
    %v233 = vsel %vm217, 1, 0
    %v234 = vsel %vm218, 1, 0
    %v235 = vsel %vm219, 1, 0
    %v236 = vsel %vm220, 1, 0
    %v237 = vsel %vm221, 1, 0
    %v238 = vsel %vm222, 1, 0
    %v239 = vsel %vm223, 1, 0
    %v240 = vsel %vm224, 1, 0
    %v241 = vsel %vm225, 1, 0
    %v242 = vsel %vm226, 1, 0
    %v243 = vsel %vm227, 1, 0
    %v244 = vcvt.s32.f32 %v228
    %v245 = vcvt.s32.f32 %v229
    %v246 = vcvt.s32.f32 %v230
    %v247 = vcvt.s32.f32 %v231
    %v248 = vcvt.s32.f32 %v232
    %v249 = vcvt.s32.f32 %v233
    %v250 = vcvt.s32.f32 %v234
    %v251 = vcvt.s32.f32 %v235
    %v252 = vcvt.s32.f32 %v236
    %v253 = vcvt.s32.f32 %v237
    %v254 = vcvt.s32.f32 %v238
    %v255 = vcvt.s32.f32 %v239
    %v256 = vcvt.s32.f32 %v240
    %v257 = vcvt.s32.f32 %v241
    %v258 = vcvt.s32.f32 %v242
    %v259 = vcvt.s32.f32 %v243
    %v260 = vadd.f32 %v192, %v244
    %v261 = vadd.f32 %v193, %v245
    %v262 = vadd.f32 %v194, %v246
    %v263 = vadd.f32 %v195, %v247
    %v264 = vadd.f32 %v196, %v248
    %v265 = vadd.f32 %v197, %v249
    %v266 = vadd.f32 %v198, %v250
    %v267 = vadd.f32 %v199, %v251
    %v268 = vadd.f32 %v200, %v252
    %v269 = vadd.f32 %v201, %v253
    %v270 = vadd.f32 %v202, %v254
    %v271 = vadd.f32 %v203, %v255
    %v272 = vadd.f32 %v204, %v256
    %v273 = vadd.f32 %v205, %v257
    %v274 = vadd.f32 %v206, %v258
    %v275 = vadd.f32 %v207, %v259
    %v276 = vlaneseq
    %v277 = vshrl.u32 %v276, 7
    %v278 = vsub.s32 3, %v277
    %v279 = vrot.slane %v36, %v278
    %vm280 = vcmp.eq.s32.totalorder %v56, %v279
    %vm281 = vcmp.eq.s32.totalorder %v57, %v279
    %vm282 = vcmp.eq.s32.totalorder %v58, %v279
    %vm283 = vcmp.eq.s32.totalorder %v59, %v279
    %vm284 = vcmp.eq.s32.totalorder %v60, %v279
    %vm285 = vcmp.eq.s32.totalorder %v61, %v279
    %vm286 = vcmp.eq.s32.totalorder %v62, %v279
    %vm287 = vcmp.eq.s32.totalorder %v63, %v279
    %vm288 = vcmp.eq.s32.totalorder %v64, %v279
    %vm289 = vcmp.eq.s32.totalorder %v65, %v279
    %vm290 = vcmp.eq.s32.totalorder %v66, %v279
    %vm291 = vcmp.eq.s32.totalorder %v67, %v279
    %vm292 = vcmp.eq.s32.totalorder %v68, %v279
    %vm293 = vcmp.eq.s32.totalorder %v69, %v279
    %vm294 = vcmp.eq.s32.totalorder %v70, %v279
    %vm295 = vcmp.eq.s32.totalorder %v71, %v279
    %v296 = vsel %vm280, 1, 0
    %v297 = vsel %vm281, 1, 0
    %v298 = vsel %vm282, 1, 0
    %v299 = vsel %vm283, 1, 0
    %v300 = vsel %vm284, 1, 0
    %v301 = vsel %vm285, 1, 0
    %v302 = vsel %vm286, 1, 0
    %v303 = vsel %vm287, 1, 0
    %v304 = vsel %vm288, 1, 0
    %v305 = vsel %vm289, 1, 0
    %v306 = vsel %vm290, 1, 0
    %v307 = vsel %vm291, 1, 0
    %v308 = vsel %vm292, 1, 0
    %v309 = vsel %vm293, 1, 0
    %v310 = vsel %vm294, 1, 0
    %v311 = vsel %vm295, 1, 0
    %v312 = vcvt.s32.f32 %v296
    %v313 = vcvt.s32.f32 %v297
    %v314 = vcvt.s32.f32 %v298
    %v315 = vcvt.s32.f32 %v299
    %v316 = vcvt.s32.f32 %v300
    %v317 = vcvt.s32.f32 %v301
    %v318 = vcvt.s32.f32 %v302
    %v319 = vcvt.s32.f32 %v303
    %v320 = vcvt.s32.f32 %v304
    %v321 = vcvt.s32.f32 %v305
    %v322 = vcvt.s32.f32 %v306
    %v323 = vcvt.s32.f32 %v307
    %v324 = vcvt.s32.f32 %v308
    %v325 = vcvt.s32.f32 %v309
    %v326 = vcvt.s32.f32 %v310
    %v327 = vcvt.s32.f32 %v311
    %v328 = vadd.f32 %v260, %v312
    %v329 = vadd.f32 %v261, %v313
    %v330 = vadd.f32 %v262, %v314
    %v331 = vadd.f32 %v263, %v315
    %v332 = vadd.f32 %v264, %v316
    %v333 = vadd.f32 %v265, %v317
    %v334 = vadd.f32 %v266, %v318
    %v335 = vadd.f32 %v267, %v319
    %v336 = vadd.f32 %v268, %v320
    %v337 = vadd.f32 %v269, %v321
    %v338 = vadd.f32 %v270, %v322
    %v339 = vadd.f32 %v271, %v323
    %v340 = vadd.f32 %v272, %v324
    %v341 = vadd.f32 %v273, %v325
    %v342 = vadd.f32 %v274, %v326
    %v343 = vadd.f32 %v275, %v327
    %v344 = vlaneseq
    %v345 = vshrl.u32 %v344, 7
    %v346 = vsub.s32 4, %v345
    %v347 = vrot.slane %v36, %v346
    %vm348 = vcmp.eq.s32.totalorder %v56, %v347
    %vm349 = vcmp.eq.s32.totalorder %v57, %v347
    %vm350 = vcmp.eq.s32.totalorder %v58, %v347
    %vm351 = vcmp.eq.s32.totalorder %v59, %v347
    %vm352 = vcmp.eq.s32.totalorder %v60, %v347
    %vm353 = vcmp.eq.s32.totalorder %v61, %v347
    %vm354 = vcmp.eq.s32.totalorder %v62, %v347
    %vm355 = vcmp.eq.s32.totalorder %v63, %v347
    %vm356 = vcmp.eq.s32.totalorder %v64, %v347
    %vm357 = vcmp.eq.s32.totalorder %v65, %v347
    %vm358 = vcmp.eq.s32.totalorder %v66, %v347
    %vm359 = vcmp.eq.s32.totalorder %v67, %v347
    %vm360 = vcmp.eq.s32.totalorder %v68, %v347
    %vm361 = vcmp.eq.s32.totalorder %v69, %v347
    %vm362 = vcmp.eq.s32.totalorder %v70, %v347
    %vm363 = vcmp.eq.s32.totalorder %v71, %v347
    %v364 = vsel %vm348, 1, 0
    %v365 = vsel %vm349, 1, 0
    %v366 = vsel %vm350, 1, 0
    %v367 = vsel %vm351, 1, 0
    %v368 = vsel %vm352, 1, 0
    %v369 = vsel %vm353, 1, 0
    %v370 = vsel %vm354, 1, 0
    %v371 = vsel %vm355, 1, 0
    %v372 = vsel %vm356, 1, 0
    %v373 = vsel %vm357, 1, 0
    %v374 = vsel %vm358, 1, 0
    %v375 = vsel %vm359, 1, 0
    %v376 = vsel %vm360, 1, 0
    %v377 = vsel %vm361, 1, 0
    %v378 = vsel %vm362, 1, 0
    %v379 = vsel %vm363, 1, 0
    %v380 = vcvt.s32.f32 %v364
    %v381 = vcvt.s32.f32 %v365
    %v382 = vcvt.s32.f32 %v366
    %v383 = vcvt.s32.f32 %v367
    %v384 = vcvt.s32.f32 %v368
    %v385 = vcvt.s32.f32 %v369
    %v386 = vcvt.s32.f32 %v370
    %v387 = vcvt.s32.f32 %v371
    %v388 = vcvt.s32.f32 %v372
    %v389 = vcvt.s32.f32 %v373
    %v390 = vcvt.s32.f32 %v374
    %v391 = vcvt.s32.f32 %v375
    %v392 = vcvt.s32.f32 %v376
    %v393 = vcvt.s32.f32 %v377
    %v394 = vcvt.s32.f32 %v378
    %v395 = vcvt.s32.f32 %v379
    %v396 = vadd.f32 %v328, %v380
    %v397 = vadd.f32 %v329, %v381
    %v398 = vadd.f32 %v330, %v382
    %v399 = vadd.f32 %v331, %v383
    %v400 = vadd.f32 %v332, %v384
    %v401 = vadd.f32 %v333, %v385
    %v402 = vadd.f32 %v334, %v386
    %v403 = vadd.f32 %v335, %v387
    %v404 = vadd.f32 %v336, %v388
    %v405 = vadd.f32 %v337, %v389
    %v406 = vadd.f32 %v338, %v390
    %v407 = vadd.f32 %v339, %v391
    %v408 = vadd.f32 %v340, %v392
    %v409 = vadd.f32 %v341, %v393
    %v410 = vadd.f32 %v342, %v394
    %v411 = vadd.f32 %v343, %v395
    %v412 = vlaneseq
    %v413 = vshrl.u32 %v412, 7
    %v414 = vsub.s32 5, %v413
    %v415 = vrot.slane %v36, %v414
    %vm416 = vcmp.eq.s32.totalorder %v56, %v415
    %vm417 = vcmp.eq.s32.totalorder %v57, %v415
    %vm418 = vcmp.eq.s32.totalorder %v58, %v415
    %vm419 = vcmp.eq.s32.totalorder %v59, %v415
    %vm420 = vcmp.eq.s32.totalorder %v60, %v415
    %vm421 = vcmp.eq.s32.totalorder %v61, %v415
    %vm422 = vcmp.eq.s32.totalorder %v62, %v415
    %vm423 = vcmp.eq.s32.totalorder %v63, %v415
    %vm424 = vcmp.eq.s32.totalorder %v64, %v415
    %vm425 = vcmp.eq.s32.totalorder %v65, %v415
    %vm426 = vcmp.eq.s32.totalorder %v66, %v415
    %vm427 = vcmp.eq.s32.totalorder %v67, %v415
    %vm428 = vcmp.eq.s32.totalorder %v68, %v415
    %vm429 = vcmp.eq.s32.totalorder %v69, %v415
    %vm430 = vcmp.eq.s32.totalorder %v70, %v415
    %vm431 = vcmp.eq.s32.totalorder %v71, %v415
    %v432 = vsel %vm416, 1, 0
    %v433 = vsel %vm417, 1, 0
    %v434 = vsel %vm418, 1, 0
    %v435 = vsel %vm419, 1, 0
    %v436 = vsel %vm420, 1, 0
    %v437 = vsel %vm421, 1, 0
    %v438 = vsel %vm422, 1, 0
    %v439 = vsel %vm423, 1, 0
    %v440 = vsel %vm424, 1, 0
    %v441 = vsel %vm425, 1, 0
    %v442 = vsel %vm426, 1, 0
    %v443 = vsel %vm427, 1, 0
    %v444 = vsel %vm428, 1, 0
    %v445 = vsel %vm429, 1, 0
    %v446 = vsel %vm430, 1, 0
    %v447 = vsel %vm431, 1, 0
    %v448 = vcvt.s32.f32 %v432
    %v449 = vcvt.s32.f32 %v433
    %v450 = vcvt.s32.f32 %v434
    %v451 = vcvt.s32.f32 %v435
    %v452 = vcvt.s32.f32 %v436
    %v453 = vcvt.s32.f32 %v437
    %v454 = vcvt.s32.f32 %v438
    %v455 = vcvt.s32.f32 %v439
    %v456 = vcvt.s32.f32 %v440
    %v457 = vcvt.s32.f32 %v441
    %v458 = vcvt.s32.f32 %v442
    %v459 = vcvt.s32.f32 %v443
    %v460 = vcvt.s32.f32 %v444
    %v461 = vcvt.s32.f32 %v445
    %v462 = vcvt.s32.f32 %v446
    %v463 = vcvt.s32.f32 %v447
    %v464 = vadd.f32 %v396, %v448
    %v465 = vadd.f32 %v397, %v449
    %v466 = vadd.f32 %v398, %v450
    %v467 = vadd.f32 %v399, %v451
    %v468 = vadd.f32 %v400, %v452
    %v469 = vadd.f32 %v401, %v453
    %v470 = vadd.f32 %v402, %v454
    %v471 = vadd.f32 %v403, %v455
    %v472 = vadd.f32 %v404, %v456
    %v473 = vadd.f32 %v405, %v457
    %v474 = vadd.f32 %v406, %v458
    %v475 = vadd.f32 %v407, %v459
    %v476 = vadd.f32 %v408, %v460
    %v477 = vadd.f32 %v409, %v461
    %v478 = vadd.f32 %v410, %v462
    %v479 = vadd.f32 %v411, %v463
    %v480 = vlaneseq
    %v481 = vshrl.u32 %v480, 7
    %v482 = vsub.s32 6, %v481
    %v483 = vrot.slane %v36, %v482
    %vm484 = vcmp.eq.s32.totalorder %v56, %v483
    %vm485 = vcmp.eq.s32.totalorder %v57, %v483
    %vm486 = vcmp.eq.s32.totalorder %v58, %v483
    %vm487 = vcmp.eq.s32.totalorder %v59, %v483
    %vm488 = vcmp.eq.s32.totalorder %v60, %v483
    %vm489 = vcmp.eq.s32.totalorder %v61, %v483
    %vm490 = vcmp.eq.s32.totalorder %v62, %v483
    %vm491 = vcmp.eq.s32.totalorder %v63, %v483
    %vm492 = vcmp.eq.s32.totalorder %v64, %v483
    %vm493 = vcmp.eq.s32.totalorder %v65, %v483
    %vm494 = vcmp.eq.s32.totalorder %v66, %v483
    %vm495 = vcmp.eq.s32.totalorder %v67, %v483
    %vm496 = vcmp.eq.s32.totalorder %v68, %v483
    %vm497 = vcmp.eq.s32.totalorder %v69, %v483
    %vm498 = vcmp.eq.s32.totalorder %v70, %v483
    %vm499 = vcmp.eq.s32.totalorder %v71, %v483
    %v500 = vsel %vm484, 1, 0
    %v501 = vsel %vm485, 1, 0
    %v502 = vsel %vm486, 1, 0
    %v503 = vsel %vm487, 1, 0
    %v504 = vsel %vm488, 1, 0
    %v505 = vsel %vm489, 1, 0
    %v506 = vsel %vm490, 1, 0
    %v507 = vsel %vm491, 1, 0
    %v508 = vsel %vm492, 1, 0
    %v509 = vsel %vm493, 1, 0
    %v510 = vsel %vm494, 1, 0
    %v511 = vsel %vm495, 1, 0
    %v512 = vsel %vm496, 1, 0
    %v513 = vsel %vm497, 1, 0
    %v514 = vsel %vm498, 1, 0
    %v515 = vsel %vm499, 1, 0
    %v516 = vcvt.s32.f32 %v500
    %v517 = vcvt.s32.f32 %v501
    %v518 = vcvt.s32.f32 %v502
    %v519 = vcvt.s32.f32 %v503
    %v520 = vcvt.s32.f32 %v504
    %v521 = vcvt.s32.f32 %v505
    %v522 = vcvt.s32.f32 %v506
    %v523 = vcvt.s32.f32 %v507
    %v524 = vcvt.s32.f32 %v508
    %v525 = vcvt.s32.f32 %v509
    %v526 = vcvt.s32.f32 %v510
    %v527 = vcvt.s32.f32 %v511
    %v528 = vcvt.s32.f32 %v512
    %v529 = vcvt.s32.f32 %v513
    %v530 = vcvt.s32.f32 %v514
    %v531 = vcvt.s32.f32 %v515
    %v532 = vadd.f32 %v464, %v516
    %v533 = vadd.f32 %v465, %v517
    %v534 = vadd.f32 %v466, %v518
    %v535 = vadd.f32 %v467, %v519
    %v536 = vadd.f32 %v468, %v520
    %v537 = vadd.f32 %v469, %v521
    %v538 = vadd.f32 %v470, %v522
    %v539 = vadd.f32 %v471, %v523
    %v540 = vadd.f32 %v472, %v524
    %v541 = vadd.f32 %v473, %v525
    %v542 = vadd.f32 %v474, %v526
    %v543 = vadd.f32 %v475, %v527
    %v544 = vadd.f32 %v476, %v528
    %v545 = vadd.f32 %v477, %v529
    %v546 = vadd.f32 %v478, %v530
    %v547 = vadd.f32 %v479, %v531
    %v548 = vlaneseq
    %v549 = vshrl.u32 %v548, 7
    %v550 = vsub.s32 7, %v549
    %v551 = vrot.slane %v36, %v550
    %vm552 = vcmp.eq.s32.totalorder %v56, %v551
    %vm553 = vcmp.eq.s32.totalorder %v57, %v551
    %vm554 = vcmp.eq.s32.totalorder %v58, %v551
    %vm555 = vcmp.eq.s32.totalorder %v59, %v551
    %vm556 = vcmp.eq.s32.totalorder %v60, %v551
    %vm557 = vcmp.eq.s32.totalorder %v61, %v551
    %vm558 = vcmp.eq.s32.totalorder %v62, %v551
    %vm559 = vcmp.eq.s32.totalorder %v63, %v551
    %vm560 = vcmp.eq.s32.totalorder %v64, %v551
    %vm561 = vcmp.eq.s32.totalorder %v65, %v551
    %vm562 = vcmp.eq.s32.totalorder %v66, %v551
    %vm563 = vcmp.eq.s32.totalorder %v67, %v551
    %vm564 = vcmp.eq.s32.totalorder %v68, %v551
    %vm565 = vcmp.eq.s32.totalorder %v69, %v551
    %vm566 = vcmp.eq.s32.totalorder %v70, %v551
    %vm567 = vcmp.eq.s32.totalorder %v71, %v551
    %v568 = vsel %vm552, 1, 0
    %v569 = vsel %vm553, 1, 0
    %v570 = vsel %vm554, 1, 0
    %v571 = vsel %vm555, 1, 0
    %v572 = vsel %vm556, 1, 0
    %v573 = vsel %vm557, 1, 0
    %v574 = vsel %vm558, 1, 0
    %v575 = vsel %vm559, 1, 0
    %v576 = vsel %vm560, 1, 0
    %v577 = vsel %vm561, 1, 0
    %v578 = vsel %vm562, 1, 0
    %v579 = vsel %vm563, 1, 0
    %v580 = vsel %vm564, 1, 0
    %v581 = vsel %vm565, 1, 0
    %v582 = vsel %vm566, 1, 0
    %v583 = vsel %vm567, 1, 0
    %v584 = vcvt.s32.f32 %v568
    %v585 = vcvt.s32.f32 %v569
    %v586 = vcvt.s32.f32 %v570
    %v587 = vcvt.s32.f32 %v571
    %v588 = vcvt.s32.f32 %v572
    %v589 = vcvt.s32.f32 %v573
    %v590 = vcvt.s32.f32 %v574
    %v591 = vcvt.s32.f32 %v575
    %v592 = vcvt.s32.f32 %v576
    %v593 = vcvt.s32.f32 %v577
    %v594 = vcvt.s32.f32 %v578
    %v595 = vcvt.s32.f32 %v579
    %v596 = vcvt.s32.f32 %v580
    %v597 = vcvt.s32.f32 %v581
    %v598 = vcvt.s32.f32 %v582
    %v599 = vcvt.s32.f32 %v583
    %v600 = vadd.f32 %v532, %v584
    %v601 = vadd.f32 %v533, %v585
    %v602 = vadd.f32 %v534, %v586
    %v603 = vadd.f32 %v535, %v587
    %v604 = vadd.f32 %v536, %v588
    %v605 = vadd.f32 %v537, %v589
    %v606 = vadd.f32 %v538, %v590
    %v607 = vadd.f32 %v539, %v591
    %v608 = vadd.f32 %v540, %v592
    %v609 = vadd.f32 %v541, %v593
    %v610 = vadd.f32 %v542, %v594
    %v611 = vadd.f32 %v543, %v595
    %v612 = vadd.f32 %v544, %v596
    %v613 = vadd.f32 %v545, %v597
    %v614 = vadd.f32 %v546, %v598
    %v615 = vadd.f32 %v547, %v599
    %v616 = vld [vmem:[#allocation2] sm:$0x1]
    %v617 = vld [vmem:[%s2] sm:$0x1]
    %618 = vmatprep.subr.mxu0 0.0
    %619 = vmatpush1.msra.mxu0 %v615
    %620 = vmatprep.subr.mxu0 0.0
    %621 = vmatpush1.msra.mxu0 %v614
    %622 = vmatprep.subr.mxu0 0.0
    %623 = vmatpush1.msra.mxu0 %v613
    %624 = vmatprep.subr.mxu0 0.0
    %625 = vmatpush1.msra.mxu0 %v612
    %626 = vmatprep.subr.mxu0 0.0
    %627 = vmatpush1.msra.mxu0 %v611
    %628 = vmatprep.subr.mxu0 0.0
    %629 = vmatpush1.msra.mxu0 %v610
    %630 = vmatprep.subr.mxu0 0.0
    %631 = vmatpush1.msra.mxu0 %v609
    %632 = vmatprep.subr.mxu0 0.0
    %633 = vmatpush1.msra.mxu0 %v608
    %634 = vmatprep.subr.mxu0 0.0
    %635 = vmatpush1.msra.mxu0 %v607
    %636 = vmatprep.subr.mxu0 0.0
    %637 = vmatpush1.msra.mxu0 %v606
    %638 = vmatprep.subr.mxu0 0.0
    %639 = vmatpush1.msra.mxu0 %v605
    %640 = vmatprep.subr.mxu0 0.0
    %641 = vmatpush1.msra.mxu0 %v604
    %642 = vmatprep.subr.mxu0 0.0
    %643 = vmatpush1.msra.mxu0 %v603
    %644 = vmatprep.subr.mxu0 0.0
    %645 = vmatpush1.msra.mxu0 %v602
    %646 = vmatprep.subr.mxu0 0.0
    %647 = vmatpush1.msra.mxu0 %v601
    %648 = vmatprep.subr.mxu0 0.0
    %649 = vmatpush1.msra.mxu0 %v600
    %650 = vmatprep.subr.mxu0 0.0
    %651 = vmatpush2.msra.mxu0 0.0
    %652 = vmatprep.subr.mxu0 0.0
    %653 = vmatpush2.msra.mxu0 0.0
    %654 = vmatprep.subr.mxu0 0.0
    %655 = vmatpush2.msra.mxu0 0.0
    %656 = vmatprep.subr.mxu0 0.0
    %657 = vmatpush2.msra.mxu0 0.0
    %658 = vmatprep.subr.mxu0 0.0
    %659 = vmatpush2.msra.mxu0 0.0
    %660 = vmatprep.subr.mxu0 0.0
    %661 = vmatpush2.msra.mxu0 0.0
    %662 = vmatprep.subr.mxu0 0.0
    %663 = vmatpush2.msra.mxu0 0.0
    %664 = vmatprep.subr.mxu0 0.0
    %665 = vmatpush2.msra.mxu0 0.0
    %666 = vmatprep.subr.mxu0 0.0
    %667 = vmatpush2.msra.mxu0 0.0
    %668 = vmatprep.subr.mxu0 0.0
    %669 = vmatpush2.msra.mxu0 0.0
    %670 = vmatprep.subr.mxu0 0.0
    %671 = vmatpush2.msra.mxu0 0.0
    %672 = vmatprep.subr.mxu0 0.0
    %673 = vmatpush2.msra.mxu0 0.0
    %674 = vmatprep.subr.mxu0 0.0
    %675 = vmatpush2.msra.mxu0 0.0
    %676 = vmatprep.subr.mxu0 0.0
    %677 = vmatpush2.msra.mxu0 0.0
    %678 = vmatprep.subr.mxu0 0.0
    %679 = vmatpush2.msra.mxu0 0.0
    %680 = vmatprep.subr.mxu0 0.0
    %681 = vmatpush2.msra.mxu0 0.0
    %682 = vmatprep.mubr.f32.mxu0 0.0
    %683 = vmatmul.mubr.f32.gmra.mxu0 %v617
    %v684 = vpop.f32.mrf.mxu0
    %v685 = vadd.f32 0.0, %v684
    %v686 = vpop.f32.mrf.mxu0
    %687 = vdwg.mxu0
    %v688 = vadd.f32 %v616, %v685
    %689 = vst [vmem:[#allocation2] sm:$0x1] %v688
    // Predicated region
    $region26: #{tpu_custom_call.1} parent=1 // pred_check
      %p690 = pneg %p31
    $region27: #{tpu_custom_call.1} parent=1 // pred_check_branch
      %692 = sbr.rel (%p690) target = $region29
    $region28: #{tpu_custom_call.1} parent=1 // pred_region
      %v693 = vld [vmem:[#allocation2] sm:$0x1]
      %v694 = vld [vmem:[%s1] sm:$0x1]
      %v695 = vrcp.pop %v694
      %v696 = vmul.f32 %v693, %v695
      %s697 = sld [smem:[#allocation3]]
      %v698 = vstv %s697
      %v699 = vadd.f32 %v696, %v698
      %v700 = vxor.u32 %v699, 2147483648
      %v701 = vmul.f32 %v700, 1.442695
      %v702 = vpow.pop %v701
      %v703 = vadd.f32 %v702, 1.0
      %v704 = vrcp.pop %v703
      %v705 = vmul.f32 1.0, %v704
      %706 = vst [vmem:[#allocation7] sm:$0x1] %v705
    $region29: #{tpu_custom_call.1} parent=1 // pred_fallthru
      _
    // Predicated region
    $region30: #{tpu_custom_call.1} parent=1 // pred_check
      _
    $region31: #{tpu_custom_call.1} parent=1 // pred_check_branch
      %708 = sbr.rel (0) target = $region33
    $region32: #{tpu_custom_call.1} parent=1 // pred_region
      %s710 = ssub.s32 16, 16
      %711 = vsyncadd [#allocation6], %s710
      %s713 = sshll.u32 [#allocation7], 4
      %s714 = int_to_ptr.vmem [resolvable:$true] %s713
      %716 = dma.vmem_to_hbm [thread:$0]  %s714, 16, %s4, [#allocation6]
    $region33: #{tpu_custom_call.1} parent=1 // pred_fallthru
      _
    // Predicated region
    $region34: #{tpu_custom_call.1} parent=1 // pred_check
      _
    $region35: #{tpu_custom_call.1} parent=1 // pred_check_branch
      %718 = sbr.rel (0) target = $region37
    $region36: #{tpu_custom_call.1} parent=1 // pred_region
      %719 = dma.done [#allocation6], 16
    $region37: #{tpu_custom_call.1} parent=1 // pred_fallthru
      _
    %720 = vsyncpa [#allocation5], 1
    %721 = vsyncpa [#allocation6], 1

</llo_original>
